<compile_context>
chip_gen: v7x
topology: tpu7x:2x2x1
jax: 0.10.0
libtpu: 0.0.40
codegen_flags: <defaults>
</compile_context>

<pallas_src>
import jax
import jax.numpy as jnp
from jax import lax
from jax.experimental import pallas as pl
from jax.experimental.pallas import tpu as pltpu


def _round_up(x: int, m: int) -> int:
    return ((x + m - 1) // m) * m


def relation_kernel(a_ref, b_ref, o_ref, acc_ref):
    """One (tm, tn) tile of R = X X^T, accumulated over the K (feature) grid axis."""

    @pl.when(pl.program_id(2) == 0)
    def _init():
        acc_ref[...] = jnp.zeros_like(acc_ref)

    # Contract the last axis of both operands (X_i @ X_j^T) directly via
    # dot_general: no transposed copy of X is materialized (the MXU takes the
    # transposed-RHS contraction natively), accumulate in f32 regardless of the
    # operand dtype (bf16 inputs keep full MXU throughput on v6e/v7x).
    acc_ref[...] += lax.dot_general(
        a_ref[...],
        b_ref[...],
        dimension_numbers=(((1,), (1,)), ((), ())),
        preferred_element_type=jnp.float32,
    )

    @pl.when(pl.program_id(2) == pl.num_programs(2) - 1)
    def _finalize():
        o_ref[...] = acc_ref[...].astype(o_ref.dtype)


def _relation_pallas(x_flat: jax.Array, *, tm: int = 128, tn: int = 128,
                     tk: int = 512) -> jax.Array:
    """Tiled Gram matrix of x_flat (B, D) -> (B, B) float32 via Pallas."""
    b, d = x_flat.shape

    # Lane-dense, MXU-aligned padding.  Zero padding is exact for the Gram
    # matrix: padded rows only produce (discarded) zero relation entries and
    # padded feature columns contribute nothing to the dot products.
    # 128-aligned tiles saturate the v5e MXU and are legal on v6e/v7x; tiles
    # are small (128*512*4 B per input block, double-buffered) so the kernel
    # fits comfortably inside v7x's 64 MiB VMEM as well.
    bp = max(_round_up(b, max(tm, tn)), max(tm, tn))
    dp = _round_up(max(d, 128), 128)
    tk = min(tk, dp)
    dp = _round_up(dp, tk)

    x_p = jnp.zeros((bp, dp), dtype=x_flat.dtype).at[:b, :d].set(x_flat)

    grid = (bp // tm, bp // tn, dp // tk)

    out_p = pl.pallas_call(
        relation_kernel,
        out_shape=jax.ShapeDtypeStruct((bp, bp), jnp.float32),
        grid_spec=pltpu.PrefetchScalarGridSpec(
            num_scalar_prefetch=0,
            grid=grid,
            in_specs=[
                pl.BlockSpec((tm, tk), lambda i, j, k: (i, k)),
                pl.BlockSpec((tn, tk), lambda i, j, k: (j, k)),
            ],
            out_specs=pl.BlockSpec((tm, tn), lambda i, j, k: (i, j)),
            scratch_shapes=[pltpu.VMEM((tm, tn), jnp.float32)],
        ),
        compiler_params=pltpu.CompilerParams(
            # i/j are independent output tiles -> shardable across the two
            # TensorCores on v7x; k is the reduction axis.
            dimension_semantics=("parallel", "parallel", "arbitrary"),
        ),
    )(x_p, x_p)

    return out_p[:b, :b]


def relation(inputs: jax.Array, *, force_pallas: bool = False) -> jax.Array:
    """Pairwise sample relation matrix R = X X^T of the flattened inputs.

    Input follows PyTorch NCHW (B, C, H, W); it is flattened to (B, D) with the
    feature axis on lanes.  Output is the (B, B) relation matrix in float32.
    Inputs are fed to the kernel in their native dtype (no wrapper upcast);
    bf16 inputs keep bf16 HBM traffic with an f32 MXU accumulate.
    """
    b = inputs.shape[0]
    x_flat = inputs.reshape(b, -1)
    d = x_flat.shape[1]

    # For genuinely tiny problems the pallas_call launch + padding dwarfs the
    # few thousand MACs of math; plain XLA dot is the faster path there.
    if not force_pallas and b <= 8 and d <= 4096:
        return lax.dot_general(
            x_flat,
            x_flat,
            dimension_numbers=(((1,), (1,)), ((), ())),
            preferred_element_type=jnp.float32,
        )

    return _relation_pallas(x_flat)


if __name__ == "__main__":
    key = jax.random.PRNGKey(0)
    # Small NCHW input consistent with an image autoencoder: (B, C, H, W).
    x = jax.random.normal(key, (2, 4, 16, 16), dtype=jnp.float32)

    # Exercise the Pallas kernel path.
    out = jax.block_until_ready(relation(x, force_pallas=True))

    # Pure-JAX reference check.
    x_flat = x.reshape(x.shape[0], -1)
    ref = x_flat @ x_flat.T
    assert out.shape == (2, 2), out.shape
    assert jnp.allclose(out, ref, atol=1e-3, rtol=1e-3), (out, ref)

    # Also check the small-shape fast path agrees.
    out_small = jax.block_until_ready(relation(x))
    assert jnp.allclose(out_small, ref, atol=1e-3, rtol=1e-3)

    print("KERNEL_OK")
</pallas_src>

<mosaic_0001>
module attributes {stable_mosaic.version = 11 : i64} {
  func.func @relation_kernel(%arg0: i32, %arg1: i32, %arg2: i32, %arg3: memref<128x512xf32, #tpu.memory_space<vmem>>, %arg4: memref<128x512xf32, #tpu.memory_space<vmem>>, %arg5: memref<128x128xf32, #tpu.memory_space<vmem>>, %arg6: memref<128x128xf32, #tpu.memory_space<vmem>>) attributes {dimension_semantics = [#tpu.dimension_semantics<parallel>, #tpu.dimension_semantics<parallel>, #tpu.dimension_semantics<arbitrary>], iteration_bounds = array<i64: 1, 1, 2>, scalar_prefetch = 0 : i64, scratch_operands = 1 : i64, tpu.core_type = #tpu.core_type<tc>, window_params = [{transform_indices = @transform_0, window_bounds = array<i64: 128, 512>}, {transform_indices = @transform_1, window_bounds = array<i64: 128, 512>}, {transform_indices = @transform_2, window_bounds = array<i64: 128, 128>}]} {
    %c0_i32 = arith.constant 0 : i32
    %0 = arith.cmpi eq, %arg2, %c0_i32 : i32
    %1 = arith.extui %0 : i1 to i32
    %c0_i32_0 = arith.constant 0 : i32
    %2 = arith.cmpi ne, %1, %c0_i32_0 : i32
    scf.if %2 {
      %cst_9 = arith.constant 0.000000e+00 : f32
      %12 = vector.broadcast %cst_9 : f32 to vector<128x128xf32>
      %c0_10 = arith.constant 0 : index
      %c0_11 = arith.constant 0 : index
      %13 = vector.load %arg6[%c0_10, %c0_11] : memref<128x128xf32, #tpu.memory_space<vmem>>, vector<128x128xf32>
      tpu.vector_store %arg6[%c0_10, %c0_11], %12 {strides = array<i32>} : memref<128x128xf32, #tpu.memory_space<vmem>>, vector<128x128xf32>,
    } else {
    }
    %c0 = arith.constant 0 : index
    %c0_1 = arith.constant 0 : index
    %3 = vector.load %arg6[%c0, %c0_1] : memref<128x128xf32, #tpu.memory_space<vmem>>, vector<128x128xf32>
    %c0_2 = arith.constant 0 : index
    %c0_3 = arith.constant 0 : index
    %4 = vector.load %arg3[%c0_2, %c0_3] : memref<128x512xf32, #tpu.memory_space<vmem>>, vector<128x512xf32>
    %c0_4 = arith.constant 0 : index
    %c0_5 = arith.constant 0 : index
    %5 = vector.load %arg4[%c0_4, %c0_5] : memref<128x512xf32, #tpu.memory_space<vmem>>, vector<128x512xf32>
    %cst = arith.constant dense<0.000000e+00> : vector<128x128xf32>
    %6 = tpu.matmul %4, %5, %cst {dimension_numbers = #tpu.dot_dimension_numbers<[1], [1], [0], [0], [0, 0, 1, 0], [], []>} : vector<128x512xf32>, vector<128x512xf32>, vector<128x128xf32> -> vector<128x128xf32>
    %7 = arith.addf %3, %6 : vector<128x128xf32>
    %c0_6 = arith.constant 0 : index
    %c0_7 = arith.constant 0 : index
    %8 = vector.load %arg6[%c0_6, %c0_7] : memref<128x128xf32, #tpu.memory_space<vmem>>, vector<128x128xf32>
    tpu.vector_store %arg6[%c0_6, %c0_7], %7 {strides = array<i32>} : memref<128x128xf32, #tpu.memory_space<vmem>>, vector<128x128xf32>,
    %c1_i32 = arith.constant 1 : i32
    %9 = arith.cmpi eq, %arg2, %c1_i32 : i32
    %10 = arith.extui %9 : i1 to i32
    %c0_i32_8 = arith.constant 0 : i32
    %11 = arith.cmpi ne, %10, %c0_i32_8 : i32
    scf.if %11 {
      %c0_9 = arith.constant 0 : index
      %c0_10 = arith.constant 0 : index
      %12 = vector.load %arg6[%c0_9, %c0_10] : memref<128x128xf32, #tpu.memory_space<vmem>>, vector<128x128xf32>
      %c0_11 = arith.constant 0 : index
      %c0_12 = arith.constant 0 : index
      %13 = vector.load %arg5[%c0_11, %c0_12] : memref<128x128xf32, #tpu.memory_space<vmem>>, vector<128x128xf32>
      tpu.vector_store %arg5[%c0_11, %c0_12], %12 {strides = array<i32>} : memref<128x128xf32, #tpu.memory_space<vmem>>, vector<128x128xf32>,
    } else {
    }
    return
  }
  func.func @transform_0(%arg0: i32, %arg1: i32, %arg2: i32) -> (i32, i32) {
    %c0_i32 = arith.constant 0 : i32
    return %arg0, %arg2 : i32, i32
  }
  func.func @transform_1(%arg0: i32, %arg1: i32, %arg2: i32) -> (i32, i32) {
    %c0_i32 = arith.constant 0 : i32
    return %arg1, %arg2 : i32, i32
  }
  func.func @transform_2(%arg0: i32, %arg1: i32, %arg2: i32) -> (i32, i32) {
    %c0_i32 = arith.constant 0 : i32
    return %arg0, %arg1 : i32, i32
  }
}

</mosaic_0001>

<llo_original>
// kernel: tpu_custom_call.1
$region0: #{tpu_custom_call.1}
  #allocation0 [shape = 'u32[]', space=smem, size = 0x4, offset = 0x4, fixed_abs, tag = 'smem constant byte address 0x4 - core index']
  #allocation1 [shape = 'u32[144,128]{1,0:T(1,128)}', space=vmem, size = 0x12000, scoped, tag = 'internal scratch']
  #allocation2 [shape = 'f32[128,128]{1,0:T(8,128)}', space=vmem, size = 0x10000, scoped, tag = 'scratch operand']
  %s0 = inlined_call_operand.hbm [shape: f32[128,1024], index: 0, kind: input, shape index: {}]
  %s1 = inlined_call_operand.hbm [shape: f32[128,1024], index: 1, kind: input, shape index: {}]
  %s2 = inlined_call_operand.hbm [shape: f32[128,128], index: 2, kind: output, shape index: {}]
  %s3 = sld [smem:[#allocation0]]
  $region57: #{tpu_custom_call.1} parent=0
    _
  %s5 = ssub.s32 1, %s3
  %s6 = scalar_select 0, %s5, %s3
  $region1: #{tpu_custom_call.1} parent=0
    #allocation3 [shape = 'u8[524288]{0}', space=vmem, size = 0x80000, scoped, tag = 'input window, operand 0']
    #allocation4 [shape = 's32[2]{0}', space=sflag, size = 0x8, scoped, tag = 'scoped memory for tpu_custom_call.1']
    #allocation5 [shape = 's32[2]{0}', space=sflag, size = 0x8, scoped, tag = 'scoped memory for tpu_custom_call.1']
    #allocation6 [shape = 'u8[524288]{0}', space=vmem, size = 0x80000, scoped, tag = 'input window, operand 1']
    #allocation7 [shape = 's32[2]{0}', space=sflag, size = 0x8, scoped, tag = 'scoped memory for tpu_custom_call.1']
    #allocation8 [shape = 'u8[65536]{0}', space=vmem, size = 0x10000, scoped, tag = 'output window, operand 0, single buffered']
    %7 = vsyncpa [#allocation4], 0
    %s8 = scalar_lea.sflag [#allocation4], 1
    %9 = vsyncpa %s8, 0
    %10 = vsyncpa [#allocation7], 0
    %s11 = scalar_lea.sflag [#allocation7], 1
    %12 = vsyncpa %s11, 0
    %13 = vsyncpa [#allocation5], 0
    loop: start=0, step=1, limit=4
    $region2: #{tpu_custom_call.1} parent=1 // loop_pre_header
      _
    $region3: #{tpu_custom_call.1} parent=1 // loop_header
      %s15 = sphi 0, %s19
      %p16 = scmp.ge.s32.totalorder %s15, 4
      %s22 = sphi 0, %s41
      %s23 = sphi 0, %s37
      %s24 = sphi 0, %s33
      %s25 = sphi 0, %s22
      %s26 = sphi 0, %s23
      %s27 = sphi 0, %s24
      %s28 = sphi 0, %s25
      %s29 = sphi 0, %s26
      %s30 = sphi 0, %s27
      %s46 = sphi 0, %s48
      %s49 = sphi 0, %s46
      %s50 = sphi 0, %s49
      %s66 = sphi 0, %s50
      %s74 = sphi 0, %s76
      %s77 = sphi 0, %s74
      %s78 = sphi 0, %s77
      %s94 = sphi 0, %s78
      %s102 = sphi 0, %s104
      %s105 = sphi 0, %s102
      %s106 = sphi 0, %s105
      %s122 = sphi 0, %s106
    $region4: #{tpu_custom_call.1} parent=1 // loop_header_branch
      %18 = sbr.rel (%p16) target = $region8
    $region5: #{tpu_custom_call.1} parent=1 // loop_body
      %s20 = ssub.s32 %s15, 1
      %s21 = ssub.s32 %s15, 2
      %s31 = sadd.s32 1, %s24
      %p32 = scmp.ge.s32.totalorder %s31, 2
      %s33 = scalar_select %p32, 0, %s31
      %s34 = sadd.s32 1, %s23
      %s35 = scalar_select %p32, %s34, %s23
      %p36 = scmp.ge.s32.totalorder %s35, 1
      %s37 = scalar_select %p36, 0, %s35
      %s38 = sadd.s32 1, %s22
      %s39 = scalar_select %p36, %s38, %s22
      %p40 = scmp.ge.s32.totalorder %s39, 1
      %s41 = scalar_select %p40, 0, %s39
      %s42 = ssub.s32 %s22, %s41
      %s43 = ssub.s32 %s24, %s33
      %s44 = sor.u32 %s42, %s43
      %p45 = scmp.eq.s32.totalorder %s44, 0
      %s47 = sadd.s32 %s46, 1
      %s48 = scalar_select %p45, %s46, %s47
      %p51 = pneg %p45
      %p52 = scmp.eq.s32.totalorder %s15, 1
      %p53 = por %p51, %p52
      %p54 = scmp.ne.s32.totalorder %s46, %s49
      %p55 = scmp.eq.s32.totalorder %s15, 0
      %p56 = por %p54, %p55
      %p57 = scmp.ne.s32.totalorder %s46, %s49
      %p58 = scmp.eq.s32.totalorder %s20, 1
      %p59 = por %p57, %p58
      %p60 = scmp.ne.s32.totalorder %s49, %s50
      %p61 = scmp.eq.s32.totalorder %s20, 0
      %p62 = por %p60, %p61
      %p63 = scmp.ne.s32.totalorder %s49, %s50
      %p64 = scmp.eq.s32.totalorder %s21, 1
      %p65 = por %p63, %p64
      %p67 = scmp.ne.s32.totalorder %s50, %s66
      %p68 = scmp.eq.s32.totalorder %s21, 0
      %p69 = por %p67, %p68
      %s70 = ssub.s32 %s23, %s37
      %s71 = ssub.s32 %s24, %s33
      %s72 = sor.u32 %s70, %s71
      %p73 = scmp.eq.s32.totalorder %s72, 0
      %s75 = sadd.s32 %s74, 1
      %s76 = scalar_select %p73, %s74, %s75
      %p79 = pneg %p73
      %p80 = scmp.eq.s32.totalorder %s15, 1
      %p81 = por %p79, %p80
      %p82 = scmp.ne.s32.totalorder %s74, %s77
      %p83 = scmp.eq.s32.totalorder %s15, 0
      %p84 = por %p82, %p83
      %p85 = scmp.ne.s32.totalorder %s74, %s77
      %p86 = scmp.eq.s32.totalorder %s20, 1
      %p87 = por %p85, %p86
      %p88 = scmp.ne.s32.totalorder %s77, %s78
      %p89 = scmp.eq.s32.totalorder %s20, 0
      %p90 = por %p88, %p89
      %p91 = scmp.ne.s32.totalorder %s77, %s78
      %p92 = scmp.eq.s32.totalorder %s21, 1
      %p93 = por %p91, %p92
      %p95 = scmp.ne.s32.totalorder %s78, %s94
      %p96 = scmp.eq.s32.totalorder %s21, 0
      %p97 = por %p95, %p96
      %s98 = ssub.s32 %s22, %s41
      %s99 = ssub.s32 %s23, %s37
      %s100 = sor.u32 %s98, %s99
      %p101 = scmp.eq.s32.totalorder %s100, 0
      %s103 = sadd.s32 %s102, 1
      %s104 = scalar_select %p101, %s102, %s103
      %p107 = pneg %p101
      %p108 = scmp.eq.s32.totalorder %s15, 1
      %p109 = por %p107, %p108
      %p110 = scmp.ne.s32.totalorder %s102, %s105
      %p111 = scmp.eq.s32.totalorder %s15, 0
      %p112 = por %p110, %p111
      %p113 = scmp.ne.s32.totalorder %s102, %s105
      %p114 = scmp.eq.s32.totalorder %s20, 1
      %p115 = por %p113, %p114
      %p116 = scmp.ne.s32.totalorder %s105, %s106
      %p117 = scmp.eq.s32.totalorder %s20, 0
      %p118 = por %p116, %p117
      %p119 = scmp.ne.s32.totalorder %s105, %s106
      %p120 = scmp.eq.s32.totalorder %s21, 1
      %p121 = por %p119, %p120
      %p123 = scmp.ne.s32.totalorder %s106, %s122
      %p124 = scmp.eq.s32.totalorder %s21, 0
      %p125 = por %p123, %p124
      %p126 = scmp.le.s32.totalorder 1, %s15
      %p127 = scmp.lt.s32.totalorder %s15, 3
      %p128 = pnand %p126, %p127
      %p129 = pneg %p128
      // Predicated region
      $region9: #{tpu_custom_call.1} parent=5 // pred_check
        _
      $region10: #{tpu_custom_call.1} parent=5 // pred_check_branch
        %131 = sbr.rel (%p128) target = $region12
      $region11: #{tpu_custom_call.1} parent=5 // pred_region
        %s132 = ssub.s32 %s15, 1
      $region12: #{tpu_custom_call.1} parent=5 // pred_fallthru
        _
      %p133 = scmp.lt.s32.totalorder %s15, 2
      // Predicated region
      $region13: #{tpu_custom_call.1} parent=5 // pred_check
        %p134 = pneg %p133
      $region14: #{tpu_custom_call.1} parent=5 // pred_check_branch
        %136 = sbr.rel (%p134) target = $region16
      $region15: #{tpu_custom_call.1} parent=5 // pred_region
        // Predicated region
        $region17: #{tpu_custom_call.1} parent=15 // pred_check
          %p137 = pneg %p56
        $region18: #{tpu_custom_call.1} parent=15 // pred_check_branch
          %139 = sbr.rel (%p137) target = $region20
        $region19: #{tpu_custom_call.1} parent=15 // pred_region
          %s140 = sand.u32 %s46, 1
          %s141 = scalar_lea.sflag [#allocation4], %s140
          %s142 = sand.u32 %s46, 1
          %s143 = smul.addr %s142, 512
          %s144 = scalar_lea.vmem [#allocation3], %s143
          %s145 = smul.u32 16, %s22
          %s146 = smul.u32 4, %s24
          %s148 = ssub.s32 8192, 8192
          %149 = vsyncadd %s141, %s148
          %s150 = smul.addr %s145, 8
          %s151 = sadd.s32 %s146, %s150
          %s152 = smul.addr %s151, 128
          %s153 = scalar_lea.hbm %s0, %s152
          %s154 = sshll.u32 %s144, 4
          %s155 = int_to_ptr.vmem [resolvable:$true] %s154
          %160 = dma.hbm_to_vmem [thread:$0]  %s153, 8192, %s155, %s141, 1024, 512, 32
        $region20: #{tpu_custom_call.1} parent=15 // pred_fallthru
          _
        // Predicated region
        $region21: #{tpu_custom_call.1} parent=15 // pred_check
          %p161 = pneg %p84
        $region22: #{tpu_custom_call.1} parent=15 // pred_check_branch
          %163 = sbr.rel (%p161) target = $region24
        $region23: #{tpu_custom_call.1} parent=15 // pred_region
          %s164 = sand.u32 %s74, 1
          %s165 = scalar_lea.sflag [#allocation7], %s164
          %s166 = sand.u32 %s74, 1
          %s167 = smul.addr %s166, 512
          %s168 = scalar_lea.vmem [#allocation6], %s167
          %s169 = smul.u32 16, %s23
          %s170 = smul.u32 4, %s24
          %s172 = ssub.s32 8192, 8192
          %173 = vsyncadd %s165, %s172
          %s174 = smul.addr %s169, 8
          %s175 = sadd.s32 %s170, %s174
          %s176 = smul.addr %s175, 128
          %s177 = scalar_lea.hbm %s1, %s176
          %s178 = sshll.u32 %s168, 4
          %s179 = int_to_ptr.vmem [resolvable:$true] %s178
          %184 = dma.hbm_to_vmem [thread:$0]  %s177, 8192, %s179, %s165, 1024, 512, 32
        $region24: #{tpu_custom_call.1} parent=15 // pred_fallthru
          _
      $region16: #{tpu_custom_call.1} parent=5 // pred_fallthru
        _
      %p185 = scmp.le.s32.totalorder 1, %s15
      %p186 = scmp.lt.s32.totalorder %s15, 3
      %p187 = pnand %p185, %p186
      %p188 = pneg %p187
      // Predicated region
      $region25: #{tpu_custom_call.1} parent=5 // pred_check
        _
      $region26: #{tpu_custom_call.1} parent=5 // pred_check_branch
        %190 = sbr.rel (%p187) target = $region28
      $region27: #{tpu_custom_call.1} parent=5 // pred_region
        %s191 = ssub.s32 %s15, 1
        %s192 = sand.u32 %s49, 1
        %s193 = scalar_lea.sflag [#allocation4], %s192
        %s194 = sand.u32 %s49, 1
        %s195 = smul.addr %s194, 512
        %s196 = scalar_lea.vmem [#allocation3], %s195
        // Predicated region
        $region29: #{tpu_custom_call.1} parent=27 // pred_check
          %p197 = pneg %p62
        $region30: #{tpu_custom_call.1} parent=27 // pred_check_branch
          %199 = sbr.rel (%p197) target = $region32
        $region31: #{tpu_custom_call.1} parent=27 // pred_region
          %200 = dma.done %s193, 8192
        $region32: #{tpu_custom_call.1} parent=27 // pred_fallthru
          _
        %s201 = sand.u32 %s77, 1
        %s202 = scalar_lea.sflag [#allocation7], %s201
        %s203 = sand.u32 %s77, 1
        %s204 = smul.addr %s203, 512
        %s205 = scalar_lea.vmem [#allocation6], %s204
        // Predicated region
        $region33: #{tpu_custom_call.1} parent=27 // pred_check
          %p206 = pneg %p90
        $region34: #{tpu_custom_call.1} parent=27 // pred_check_branch
          %208 = sbr.rel (%p206) target = $region36
        $region35: #{tpu_custom_call.1} parent=27 // pred_region
          %209 = dma.done %s202, 8192
        $region36: #{tpu_custom_call.1} parent=27 // pred_fallthru
          _
        %s210 = sand.u32 %s49, 1
        %s211 = scalar_lea.sflag [#allocation4], %s210
        %s212 = sand.u32 %s49, 1
        %s213 = smul.addr %s212, 512
        %s214 = scalar_lea.vmem [#allocation3], %s213
        %p215 = pneg %p62
        %p216 = pneg %p59
        %s217 = sand.u32 %s77, 1
        %s218 = scalar_lea.sflag [#allocation7], %s217
        %s219 = sand.u32 %s77, 1
        %s220 = smul.addr %s219, 512
        %s221 = scalar_lea.vmem [#allocation6], %s220
        %p222 = pneg %p90
        %p223 = pneg %p87
        %p224 = pneg %p118
        %p225 = pneg %p115
        %s226 = smul.u32 16, %s25
        %s227 = smul.u32 4, %s27
        %s228 = smul.u32 16, %s26
        %s229 = smul.u32 4, %s27
        %s230 = smul.u32 16, %s25
        %p231 = scmp.eq.s32.totalorder %s27, 0
        // Predicated region
        $region37: #{tpu_custom_call.1} parent=27 // pred_check
          %p232 = pneg %p231
        $region38: #{tpu_custom_call.1} parent=27 // pred_check_branch
          %234 = sbr.rel (%p232) target = $region40
        $region39: #{tpu_custom_call.1} parent=27 // pred_region
          %235 = vst [vmem:[#allocation2] sm:$0xff] 0.0
          %236 = vst [vmem:[#allocation2 + $0x8] sm:$0xff] 0.0
          %237 = vst [vmem:[#allocation2 + $0x10] sm:$0xff] 0.0
          %238 = vst [vmem:[#allocation2 + $0x18] sm:$0xff] 0.0
          %239 = vst [vmem:[#allocation2 + $0x20] sm:$0xff] 0.0
          %240 = vst [vmem:[#allocation2 + $0x28] sm:$0xff] 0.0
          %241 = vst [vmem:[#allocation2 + $0x30] sm:$0xff] 0.0
          %242 = vst [vmem:[#allocation2 + $0x38] sm:$0xff] 0.0
          %243 = vst [vmem:[#allocation2 + $0x40] sm:$0xff] 0.0
          %244 = vst [vmem:[#allocation2 + $0x48] sm:$0xff] 0.0
          %245 = vst [vmem:[#allocation2 + $0x50] sm:$0xff] 0.0
          %246 = vst [vmem:[#allocation2 + $0x58] sm:$0xff] 0.0
          %247 = vst [vmem:[#allocation2 + $0x60] sm:$0xff] 0.0
          %248 = vst [vmem:[#allocation2 + $0x68] sm:$0xff] 0.0
          %249 = vst [vmem:[#allocation2 + $0x70] sm:$0xff] 0.0
          %250 = vst [vmem:[#allocation2 + $0x78] sm:$0xff] 0.0
        $region40: #{tpu_custom_call.1} parent=27 // pred_fallthru
          _
        %v251 = vld [vmem:[#allocation2] sm:$0xff]
        %v252 = vld [vmem:[#allocation2 + $0x8] sm:$0xff]
        %v253 = vld [vmem:[#allocation2 + $0x10] sm:$0xff]
        %v254 = vld [vmem:[#allocation2 + $0x18] sm:$0xff]
        %v255 = vld [vmem:[#allocation2 + $0x20] sm:$0xff]
        %v256 = vld [vmem:[#allocation2 + $0x28] sm:$0xff]
        %v257 = vld [vmem:[#allocation2 + $0x30] sm:$0xff]
        %v258 = vld [vmem:[#allocation2 + $0x38] sm:$0xff]
        %v259 = vld [vmem:[#allocation2 + $0x40] sm:$0xff]
        %v260 = vld [vmem:[#allocation2 + $0x48] sm:$0xff]
        %v261 = vld [vmem:[#allocation2 + $0x50] sm:$0xff]
        %v262 = vld [vmem:[#allocation2 + $0x58] sm:$0xff]
        %v263 = vld [vmem:[#allocation2 + $0x60] sm:$0xff]
        %v264 = vld [vmem:[#allocation2 + $0x68] sm:$0xff]
        %v265 = vld [vmem:[#allocation2 + $0x70] sm:$0xff]
        %v266 = vld [vmem:[#allocation2 + $0x78] sm:$0xff]
        %v267 = vld [vmem:[%s196] sm:$0xff]
        %v268 = vld [vmem:[%s196 + $0x8] sm:$0xff]
        %v269 = vld [vmem:[%s196 + $0x10] sm:$0xff]
        %v270 = vld [vmem:[%s196 + $0x18] sm:$0xff]
        %v271 = vld [vmem:[%s196 + $0x20] sm:$0xff]
        %v272 = vld [vmem:[%s196 + $0x28] sm:$0xff]
        %v273 = vld [vmem:[%s196 + $0x30] sm:$0xff]
        %v274 = vld [vmem:[%s196 + $0x38] sm:$0xff]
        %v275 = vld [vmem:[%s196 + $0x40] sm:$0xff]
        %v276 = vld [vmem:[%s196 + $0x48] sm:$0xff]
        %v277 = vld [vmem:[%s196 + $0x50] sm:$0xff]
        %v278 = vld [vmem:[%s196 + $0x58] sm:$0xff]
        %v279 = vld [vmem:[%s196 + $0x60] sm:$0xff]
        %v280 = vld [vmem:[%s196 + $0x68] sm:$0xff]
        %v281 = vld [vmem:[%s196 + $0x70] sm:$0xff]
        %v282 = vld [vmem:[%s196 + $0x78] sm:$0xff]
        %v283 = vld [vmem:[%s196 + $0x80] sm:$0xff]
        %v284 = vld [vmem:[%s196 + $0x88] sm:$0xff]
        %v285 = vld [vmem:[%s196 + $0x90] sm:$0xff]
        %v286 = vld [vmem:[%s196 + $0x98] sm:$0xff]
        %v287 = vld [vmem:[%s196 + $0xa0] sm:$0xff]
        %v288 = vld [vmem:[%s196 + $0xa8] sm:$0xff]
        %v289 = vld [vmem:[%s196 + $0xb0] sm:$0xff]
        %v290 = vld [vmem:[%s196 + $0xb8] sm:$0xff]
        %v291 = vld [vmem:[%s196 + $0xc0] sm:$0xff]
        %v292 = vld [vmem:[%s196 + $0xc8] sm:$0xff]
        %v293 = vld [vmem:[%s196 + $0xd0] sm:$0xff]
        %v294 = vld [vmem:[%s196 + $0xd8] sm:$0xff]
        %v295 = vld [vmem:[%s196 + $0xe0] sm:$0xff]
        %v296 = vld [vmem:[%s196 + $0xe8] sm:$0xff]
        %v297 = vld [vmem:[%s196 + $0xf0] sm:$0xff]
        %v298 = vld [vmem:[%s196 + $0xf8] sm:$0xff]
        %v299 = vld [vmem:[%s196 + $0x100] sm:$0xff]
        %v300 = vld [vmem:[%s196 + $0x108] sm:$0xff]
        %v301 = vld [vmem:[%s196 + $0x110] sm:$0xff]
        %v302 = vld [vmem:[%s196 + $0x118] sm:$0xff]
        %v303 = vld [vmem:[%s196 + $0x120] sm:$0xff]
        %v304 = vld [vmem:[%s196 + $0x128] sm:$0xff]
        %v305 = vld [vmem:[%s196 + $0x130] sm:$0xff]
        %v306 = vld [vmem:[%s196 + $0x138] sm:$0xff]
        %v307 = vld [vmem:[%s196 + $0x140] sm:$0xff]
        %v308 = vld [vmem:[%s196 + $0x148] sm:$0xff]
        %v309 = vld [vmem:[%s196 + $0x150] sm:$0xff]
        %v310 = vld [vmem:[%s196 + $0x158] sm:$0xff]
        %v311 = vld [vmem:[%s196 + $0x160] sm:$0xff]
        %v312 = vld [vmem:[%s196 + $0x168] sm:$0xff]
        %v313 = vld [vmem:[%s196 + $0x170] sm:$0xff]
        %v314 = vld [vmem:[%s196 + $0x178] sm:$0xff]
        %v315 = vld [vmem:[%s196 + $0x180] sm:$0xff]
        %v316 = vld [vmem:[%s196 + $0x188] sm:$0xff]
        %v317 = vld [vmem:[%s196 + $0x190] sm:$0xff]
        %v318 = vld [vmem:[%s196 + $0x198] sm:$0xff]
        %v319 = vld [vmem:[%s196 + $0x1a0] sm:$0xff]
        %v320 = vld [vmem:[%s196 + $0x1a8] sm:$0xff]
        %v321 = vld [vmem:[%s196 + $0x1b0] sm:$0xff]
        %v322 = vld [vmem:[%s196 + $0x1b8] sm:$0xff]
        %v323 = vld [vmem:[%s196 + $0x1c0] sm:$0xff]
        %v324 = vld [vmem:[%s196 + $0x1c8] sm:$0xff]
        %v325 = vld [vmem:[%s196 + $0x1d0] sm:$0xff]
        %v326 = vld [vmem:[%s196 + $0x1d8] sm:$0xff]
        %v327 = vld [vmem:[%s196 + $0x1e0] sm:$0xff]
        %v328 = vld [vmem:[%s196 + $0x1e8] sm:$0xff]
        %v329 = vld [vmem:[%s196 + $0x1f0] sm:$0xff]
        %v330 = vld [vmem:[%s196 + $0x1f8] sm:$0xff]
        %v331 = vld [vmem:[%s205] sm:$0xff]
        %v332 = vld [vmem:[%s205 + $0x8] sm:$0xff]
        %v333 = vld [vmem:[%s205 + $0x10] sm:$0xff]
        %v334 = vld [vmem:[%s205 + $0x18] sm:$0xff]
        %v335 = vld [vmem:[%s205 + $0x20] sm:$0xff]
        %v336 = vld [vmem:[%s205 + $0x28] sm:$0xff]
        %v337 = vld [vmem:[%s205 + $0x30] sm:$0xff]
        %v338 = vld [vmem:[%s205 + $0x38] sm:$0xff]
        %v339 = vld [vmem:[%s205 + $0x40] sm:$0xff]
        %v340 = vld [vmem:[%s205 + $0x48] sm:$0xff]
        %v341 = vld [vmem:[%s205 + $0x50] sm:$0xff]
        %v342 = vld [vmem:[%s205 + $0x58] sm:$0xff]
        %v343 = vld [vmem:[%s205 + $0x60] sm:$0xff]
        %v344 = vld [vmem:[%s205 + $0x68] sm:$0xff]
        %v345 = vld [vmem:[%s205 + $0x70] sm:$0xff]
        %v346 = vld [vmem:[%s205 + $0x78] sm:$0xff]
        %v347 = vld [vmem:[%s205 + $0x80] sm:$0xff]
        %v348 = vld [vmem:[%s205 + $0x88] sm:$0xff]
        %v349 = vld [vmem:[%s205 + $0x90] sm:$0xff]
        %v350 = vld [vmem:[%s205 + $0x98] sm:$0xff]
        %v351 = vld [vmem:[%s205 + $0xa0] sm:$0xff]
        %v352 = vld [vmem:[%s205 + $0xa8] sm:$0xff]
        %v353 = vld [vmem:[%s205 + $0xb0] sm:$0xff]
        %v354 = vld [vmem:[%s205 + $0xb8] sm:$0xff]
        %v355 = vld [vmem:[%s205 + $0xc0] sm:$0xff]
        %v356 = vld [vmem:[%s205 + $0xc8] sm:$0xff]
        %v357 = vld [vmem:[%s205 + $0xd0] sm:$0xff]
        %v358 = vld [vmem:[%s205 + $0xd8] sm:$0xff]
        %v359 = vld [vmem:[%s205 + $0xe0] sm:$0xff]
        %v360 = vld [vmem:[%s205 + $0xe8] sm:$0xff]
        %v361 = vld [vmem:[%s205 + $0xf0] sm:$0xff]
        %v362 = vld [vmem:[%s205 + $0xf8] sm:$0xff]
        %v363 = vld [vmem:[%s205 + $0x100] sm:$0xff]
        %v364 = vld [vmem:[%s205 + $0x108] sm:$0xff]
        %v365 = vld [vmem:[%s205 + $0x110] sm:$0xff]
        %v366 = vld [vmem:[%s205 + $0x118] sm:$0xff]
        %v367 = vld [vmem:[%s205 + $0x120] sm:$0xff]
        %v368 = vld [vmem:[%s205 + $0x128] sm:$0xff]
        %v369 = vld [vmem:[%s205 + $0x130] sm:$0xff]
        %v370 = vld [vmem:[%s205 + $0x138] sm:$0xff]
        %v371 = vld [vmem:[%s205 + $0x140] sm:$0xff]
        %v372 = vld [vmem:[%s205 + $0x148] sm:$0xff]
        %v373 = vld [vmem:[%s205 + $0x150] sm:$0xff]
        %v374 = vld [vmem:[%s205 + $0x158] sm:$0xff]
        %v375 = vld [vmem:[%s205 + $0x160] sm:$0xff]
        %v376 = vld [vmem:[%s205 + $0x168] sm:$0xff]
        %v377 = vld [vmem:[%s205 + $0x170] sm:$0xff]
        %v378 = vld [vmem:[%s205 + $0x178] sm:$0xff]
        %v379 = vld [vmem:[%s205 + $0x180] sm:$0xff]
        %v380 = vld [vmem:[%s205 + $0x188] sm:$0xff]
        %v381 = vld [vmem:[%s205 + $0x190] sm:$0xff]
        %v382 = vld [vmem:[%s205 + $0x198] sm:$0xff]
        %v383 = vld [vmem:[%s205 + $0x1a0] sm:$0xff]
        %v384 = vld [vmem:[%s205 + $0x1a8] sm:$0xff]
        %v385 = vld [vmem:[%s205 + $0x1b0] sm:$0xff]
        %v386 = vld [vmem:[%s205 + $0x1b8] sm:$0xff]
        %v387 = vld [vmem:[%s205 + $0x1c0] sm:$0xff]
        %v388 = vld [vmem:[%s205 + $0x1c8] sm:$0xff]
        %v389 = vld [vmem:[%s205 + $0x1d0] sm:$0xff]
        %v390 = vld [vmem:[%s205 + $0x1d8] sm:$0xff]
        %v391 = vld [vmem:[%s205 + $0x1e0] sm:$0xff]
        %v392 = vld [vmem:[%s205 + $0x1e8] sm:$0xff]
        %v393 = vld [vmem:[%s205 + $0x1f0] sm:$0xff]
        %v394 = vld [vmem:[%s205 + $0x1f8] sm:$0xff]
        %395 = vmatprep.subr.mxu0 %v332
        %396 = vmatpush1.xpose.msra.mxu0 %v331
        %397 = vmatprep.subr.mxu0 %v336
        %398 = vmatpush1.xpose.msra.mxu0 %v335
        %399 = vmatprep.subr.mxu0 %v340
        %400 = vmatpush1.xpose.msra.mxu0 %v339
        %401 = vmatprep.subr.mxu0 %v344
        %402 = vmatpush1.xpose.msra.mxu0 %v343
        %403 = vmatprep.subr.mxu0 %v348
        %404 = vmatpush1.xpose.msra.mxu0 %v347
        %405 = vmatprep.subr.mxu0 %v352
        %406 = vmatpush1.xpose.msra.mxu0 %v351
        %407 = vmatprep.subr.mxu0 %v356
        %408 = vmatpush1.xpose.msra.mxu0 %v355
        %409 = vmatprep.subr.mxu0 %v360
        %410 = vmatpush1.xpose.msra.mxu0 %v359
        %411 = vmatprep.subr.mxu0 %v364
        %412 = vmatpush1.xpose.msra.mxu0 %v363
        %413 = vmatprep.subr.mxu0 %v368
        %414 = vmatpush1.xpose.msra.mxu0 %v367
        %415 = vmatprep.subr.mxu0 %v372
        %416 = vmatpush1.xpose.msra.mxu0 %v371
        %417 = vmatprep.subr.mxu0 %v376
        %418 = vmatpush1.xpose.msra.mxu0 %v375
        %419 = vmatprep.subr.mxu0 %v380
        %420 = vmatpush1.xpose.msra.mxu0 %v379
        %421 = vmatprep.subr.mxu0 %v384
        %422 = vmatpush1.xpose.msra.mxu0 %v383
        %423 = vmatprep.subr.mxu0 %v388
        %424 = vmatpush1.xpose.msra.mxu0 %v387
        %425 = vmatprep.subr.mxu0 %v392
        %426 = vmatpush1.xpose.msra.mxu0 %v391
        %427 = vmatprep.subr.mxu0 0.0
        %428 = vmatpush1.xpose.msra.mxu0 0.0
        %429 = vmatprep.subr.mxu0 0.0
        %430 = vmatpush1.xpose.msra.mxu0 0.0
        %431 = vmatprep.subr.mxu0 0.0
        %432 = vmatpush1.xpose.msra.mxu0 0.0
        %433 = vmatprep.subr.mxu0 0.0
        %434 = vmatpush1.xpose.msra.mxu0 0.0
        %435 = vmatprep.subr.mxu0 0.0
        %436 = vmatpush1.xpose.msra.mxu0 0.0
        %437 = vmatprep.subr.mxu0 0.0
        %438 = vmatpush1.xpose.msra.mxu0 0.0
        %439 = vmatprep.subr.mxu0 0.0
        %440 = vmatpush1.xpose.msra.mxu0 0.0
        %441 = vmatprep.subr.mxu0 0.0
        %442 = vmatpush1.xpose.msra.mxu0 0.0
        %443 = vmatprep.subr.mxu0 0.0
        %444 = vmatpush1.xpose.msra.mxu0 0.0
        %445 = vmatprep.subr.mxu0 0.0
        %446 = vmatpush1.xpose.msra.mxu0 0.0
        %447 = vmatprep.subr.mxu0 0.0
        %448 = vmatpush1.xpose.msra.mxu0 0.0
        %449 = vmatprep.subr.mxu0 0.0
        %450 = vmatpush1.xpose.msra.mxu0 0.0
        %451 = vmatprep.subr.mxu0 0.0
        %452 = vmatpush1.xpose.msra.mxu0 0.0
        %453 = vmatprep.subr.mxu0 0.0
        %454 = vmatpush1.xpose.msra.mxu0 0.0
        %455 = vmatprep.subr.mxu0 0.0
        %456 = vmatpush1.xpose.msra.mxu0 0.0
        %457 = vmatprep.subr.mxu0 0.0
        %458 = vmatpush1.xpose.msra.mxu0 0.0
        %459 = vmatprep.mubr.f32.mxu0 %v268
        %460 = vmatmul.mubr.f32.gmra.mrb[0].mxu0 %v267
        %v461 = vpop.f32.mrb[0].mxu0
        %v462 = vadd.f32 0.0, %v461
        %v463 = vpop.f32.mrb[0].mxu0
        %464 = vmatprep.mubr.f32.mxu0 %v272
        %465 = vmatmul.mubr.f32.gmra.mrb[0].mxu0 %v271
        %v466 = vpop.f32.mrb[0].mxu0
        %v467 = vadd.f32 0.0, %v466
        %v468 = vpop.f32.mrb[0].mxu0
        %469 = vmatprep.mubr.f32.mxu0 %v276
        %470 = vmatmul.mubr.f32.gmra.mrb[0].mxu0 %v275
        %v471 = vpop.f32.mrb[0].mxu0
        %v472 = vadd.f32 0.0, %v471
        %v473 = vpop.f32.mrb[0].mxu0
        %474 = vmatprep.mubr.f32.mxu0 %v280
        %475 = vmatmul.mubr.f32.gmra.mrb[0].mxu0 %v279
        %v476 = vpop.f32.mrb[0].mxu0
        %v477 = vadd.f32 0.0, %v476
        %v478 = vpop.f32.mrb[0].mxu0
        %479 = vmatprep.mubr.f32.mxu0 %v284
        %480 = vmatmul.mubr.f32.gmra.mrb[0].mxu0 %v283
        %v481 = vpop.f32.mrb[0].mxu0
        %v482 = vadd.f32 0.0, %v481
        %v483 = vpop.f32.mrb[0].mxu0
        %484 = vmatprep.mubr.f32.mxu0 %v288
        %485 = vmatmul.mubr.f32.gmra.mrb[0].mxu0 %v287
        %v486 = vpop.f32.mrb[0].mxu0
        %v487 = vadd.f32 0.0, %v486
        %v488 = vpop.f32.mrb[0].mxu0
        %489 = vmatprep.mubr.f32.mxu0 %v292
        %490 = vmatmul.mubr.f32.gmra.mrb[0].mxu0 %v291
        %v491 = vpop.f32.mrb[0].mxu0
        %v492 = vadd.f32 0.0, %v491
        %v493 = vpop.f32.mrb[0].mxu0
        %494 = vmatprep.mubr.f32.mxu0 %v296
        %495 = vmatmul.mubr.f32.gmra.mrb[0].mxu0 %v295
        %v496 = vpop.f32.mrb[0].mxu0
        %v497 = vadd.f32 0.0, %v496
        %v498 = vpop.f32.mrb[0].mxu0
        %499 = vmatprep.mubr.f32.mxu0 %v300
        %500 = vmatmul.mubr.f32.gmra.mrb[0].mxu0 %v299
        %v501 = vpop.f32.mrb[0].mxu0
        %v502 = vadd.f32 0.0, %v501
        %v503 = vpop.f32.mrb[0].mxu0
        %504 = vmatprep.mubr.f32.mxu0 %v304
        %505 = vmatmul.mubr.f32.gmra.mrb[0].mxu0 %v303
        %v506 = vpop.f32.mrb[0].mxu0
        %v507 = vadd.f32 0.0, %v506
        %v508 = vpop.f32.mrb[0].mxu0
        %509 = vmatprep.mubr.f32.mxu0 %v308
        %510 = vmatmul.mubr.f32.gmra.mrb[0].mxu0 %v307
        %v511 = vpop.f32.mrb[0].mxu0
        %v512 = vadd.f32 0.0, %v511
        %v513 = vpop.f32.mrb[0].mxu0
        %514 = vmatprep.mubr.f32.mxu0 %v312
        %515 = vmatmul.mubr.f32.gmra.mrb[0].mxu0 %v311
        %v516 = vpop.f32.mrb[0].mxu0
        %v517 = vadd.f32 0.0, %v516
        %v518 = vpop.f32.mrb[0].mxu0
        %519 = vmatprep.mubr.f32.mxu0 %v316
        %520 = vmatmul.mubr.f32.gmra.mrb[0].mxu0 %v315
        %v521 = vpop.f32.mrb[0].mxu0
        %v522 = vadd.f32 0.0, %v521
        %v523 = vpop.f32.mrb[0].mxu0
        %524 = vmatprep.mubr.f32.mxu0 %v320
        %525 = vmatmul.mubr.f32.gmra.mrb[0].mxu0 %v319
        %v526 = vpop.f32.mrb[0].mxu0
        %v527 = vadd.f32 0.0, %v526
        %v528 = vpop.f32.mrb[0].mxu0
        %529 = vmatprep.mubr.f32.mxu0 %v324
        %530 = vmatmul.mubr.f32.gmra.mrb[0].mxu0 %v323
        %v531 = vpop.f32.mrb[0].mxu0
        %v532 = vadd.f32 0.0, %v531
        %v533 = vpop.f32.mrb[0].mxu0
        %534 = vmatprep.mubr.f32.mxu0 %v328
        %535 = vmatmul.mubr.f32.gmra.mrb[0].mxu0 %v327
        %v536 = vpop.f32.mrb[0].mxu0
        %v537 = vadd.f32 0.0, %v536
        %v538 = vpop.f32.mrb[0].mxu0
        %539 = vdwg.mxu0
        %540 = vmatprep.subr.mxu0 %v334
        %541 = vmatpush1.xpose.msra.mxu0 %v333
        %542 = vmatprep.subr.mxu0 %v338
        %543 = vmatpush1.xpose.msra.mxu0 %v337
        %544 = vmatprep.subr.mxu0 %v342
        %545 = vmatpush1.xpose.msra.mxu0 %v341
        %546 = vmatprep.subr.mxu0 %v346
        %547 = vmatpush1.xpose.msra.mxu0 %v345
        %548 = vmatprep.subr.mxu0 %v350
        %549 = vmatpush1.xpose.msra.mxu0 %v349
        %550 = vmatprep.subr.mxu0 %v354
        %551 = vmatpush1.xpose.msra.mxu0 %v353
        %552 = vmatprep.subr.mxu0 %v358
        %553 = vmatpush1.xpose.msra.mxu0 %v357
        %554 = vmatprep.subr.mxu0 %v362
        %555 = vmatpush1.xpose.msra.mxu0 %v361
        %556 = vmatprep.subr.mxu0 %v366
        %557 = vmatpush1.xpose.msra.mxu0 %v365
        %558 = vmatprep.subr.mxu0 %v370
        %559 = vmatpush1.xpose.msra.mxu0 %v369
        %560 = vmatprep.subr.mxu0 %v374
        %561 = vmatpush1.xpose.msra.mxu0 %v373
        %562 = vmatprep.subr.mxu0 %v378
        %563 = vmatpush1.xpose.msra.mxu0 %v377
        %564 = vmatprep.subr.mxu0 %v382
        %565 = vmatpush1.xpose.msra.mxu0 %v381
        %566 = vmatprep.subr.mxu0 %v386
        %567 = vmatpush1.xpose.msra.mxu0 %v385
        %568 = vmatprep.subr.mxu0 %v390
        %569 = vmatpush1.xpose.msra.mxu0 %v389
        %570 = vmatprep.subr.mxu0 %v394
        %571 = vmatpush1.xpose.msra.mxu0 %v393
        %572 = vmatprep.subr.mxu0 0.0
        %573 = vmatpush1.xpose.msra.mxu0 0.0
        %574 = vmatprep.subr.mxu0 0.0
        %575 = vmatpush1.xpose.msra.mxu0 0.0
        %576 = vmatprep.subr.mxu0 0.0
        %577 = vmatpush1.xpose.msra.mxu0 0.0
        %578 = vmatprep.subr.mxu0 0.0
        %579 = vmatpush1.xpose.msra.mxu0 0.0
        %580 = vmatprep.subr.mxu0 0.0
        %581 = vmatpush1.xpose.msra.mxu0 0.0
        %582 = vmatprep.subr.mxu0 0.0
        %583 = vmatpush1.xpose.msra.mxu0 0.0
        %584 = vmatprep.subr.mxu0 0.0
        %585 = vmatpush1.xpose.msra.mxu0 0.0
        %586 = vmatprep.subr.mxu0 0.0
        %587 = vmatpush1.xpose.msra.mxu0 0.0
        %588 = vmatprep.subr.mxu0 0.0
        %589 = vmatpush1.xpose.msra.mxu0 0.0
        %590 = vmatprep.subr.mxu0 0.0
        %591 = vmatpush1.xpose.msra.mxu0 0.0
        %592 = vmatprep.subr.mxu0 0.0
        %593 = vmatpush1.xpose.msra.mxu0 0.0
        %594 = vmatprep.subr.mxu0 0.0
        %595 = vmatpush1.xpose.msra.mxu0 0.0
        %596 = vmatprep.subr.mxu0 0.0
        %597 = vmatpush1.xpose.msra.mxu0 0.0
        %598 = vmatprep.subr.mxu0 0.0
        %599 = vmatpush1.xpose.msra.mxu0 0.0
        %600 = vmatprep.subr.mxu0 0.0
        %601 = vmatpush1.xpose.msra.mxu0 0.0
        %602 = vmatprep.subr.mxu0 0.0
        %603 = vmatpush1.xpose.msra.mxu0 0.0
        %604 = vmatprep.mubr.f32.mxu0 %v270
        %605 = vmatmul.mubr.f32.gmra.mrb[0].mxu0 %v269
        %v606 = vpop.f32.mrb[0].mxu0
        %v607 = vadd.f32 %v462, %v606
        %v608 = vpop.f32.mrb[0].mxu0
        %609 = vmatprep.mubr.f32.mxu0 %v274
        %610 = vmatmul.mubr.f32.gmra.mrb[0].mxu0 %v273
        %v611 = vpop.f32.mrb[0].mxu0
        %v612 = vadd.f32 %v467, %v611
        %v613 = vpop.f32.mrb[0].mxu0
        %614 = vmatprep.mubr.f32.mxu0 %v278
        %615 = vmatmul.mubr.f32.gmra.mrb[0].mxu0 %v277
        %v616 = vpop.f32.mrb[0].mxu0
        %v617 = vadd.f32 %v472, %v616
        %v618 = vpop.f32.mrb[0].mxu0
        %619 = vmatprep.mubr.f32.mxu0 %v282
        %620 = vmatmul.mubr.f32.gmra.mrb[0].mxu0 %v281
        %v621 = vpop.f32.mrb[0].mxu0
        %v622 = vadd.f32 %v477, %v621
        %v623 = vpop.f32.mrb[0].mxu0
        %624 = vmatprep.mubr.f32.mxu0 %v286
        %625 = vmatmul.mubr.f32.gmra.mrb[0].mxu0 %v285
        %v626 = vpop.f32.mrb[0].mxu0
        %v627 = vadd.f32 %v482, %v626
        %v628 = vpop.f32.mrb[0].mxu0
        %629 = vmatprep.mubr.f32.mxu0 %v290
        %630 = vmatmul.mubr.f32.gmra.mrb[0].mxu0 %v289
        %v631 = vpop.f32.mrb[0].mxu0
        %v632 = vadd.f32 %v487, %v631
        %v633 = vpop.f32.mrb[0].mxu0
        %634 = vmatprep.mubr.f32.mxu0 %v294
        %635 = vmatmul.mubr.f32.gmra.mrb[0].mxu0 %v293
        %v636 = vpop.f32.mrb[0].mxu0
        %v637 = vadd.f32 %v492, %v636
        %v638 = vpop.f32.mrb[0].mxu0
        %639 = vmatprep.mubr.f32.mxu0 %v298
        %640 = vmatmul.mubr.f32.gmra.mrb[0].mxu0 %v297
        %v641 = vpop.f32.mrb[0].mxu0
        %v642 = vadd.f32 %v497, %v641
        %v643 = vpop.f32.mrb[0].mxu0
        %644 = vmatprep.mubr.f32.mxu0 %v302
        %645 = vmatmul.mubr.f32.gmra.mrb[0].mxu0 %v301
        %v646 = vpop.f32.mrb[0].mxu0
        %v647 = vadd.f32 %v502, %v646
        %v648 = vpop.f32.mrb[0].mxu0
        %649 = vmatprep.mubr.f32.mxu0 %v306
        %650 = vmatmul.mubr.f32.gmra.mrb[0].mxu0 %v305
        %v651 = vpop.f32.mrb[0].mxu0
        %v652 = vadd.f32 %v507, %v651
        %v653 = vpop.f32.mrb[0].mxu0
        %654 = vmatprep.mubr.f32.mxu0 %v310
        %655 = vmatmul.mubr.f32.gmra.mrb[0].mxu0 %v309
        %v656 = vpop.f32.mrb[0].mxu0
        %v657 = vadd.f32 %v512, %v656
        %v658 = vpop.f32.mrb[0].mxu0
        %659 = vmatprep.mubr.f32.mxu0 %v314
        %660 = vmatmul.mubr.f32.gmra.mrb[0].mxu0 %v313
        %v661 = vpop.f32.mrb[0].mxu0
        %v662 = vadd.f32 %v517, %v661
        %v663 = vpop.f32.mrb[0].mxu0
        %664 = vmatprep.mubr.f32.mxu0 %v318
        %665 = vmatmul.mubr.f32.gmra.mrb[0].mxu0 %v317
        %v666 = vpop.f32.mrb[0].mxu0
        %v667 = vadd.f32 %v522, %v666
        %v668 = vpop.f32.mrb[0].mxu0
        %669 = vmatprep.mubr.f32.mxu0 %v322
        %670 = vmatmul.mubr.f32.gmra.mrb[0].mxu0 %v321
        %v671 = vpop.f32.mrb[0].mxu0
        %v672 = vadd.f32 %v527, %v671
        %v673 = vpop.f32.mrb[0].mxu0
        %674 = vmatprep.mubr.f32.mxu0 %v326
        %675 = vmatmul.mubr.f32.gmra.mrb[0].mxu0 %v325
        %v676 = vpop.f32.mrb[0].mxu0
        %v677 = vadd.f32 %v532, %v676
        %v678 = vpop.f32.mrb[0].mxu0
        %679 = vmatprep.mubr.f32.mxu0 %v330
        %680 = vmatmul.mubr.f32.gmra.mrb[0].mxu0 %v329
        %v681 = vpop.f32.mrb[0].mxu0
        %v682 = vadd.f32 %v537, %v681
        %v683 = vpop.f32.mrb[0].mxu0
        %684 = vdwg.mxu0
        %v685 = vadd.f32 %v251, %v607
        %v686 = vadd.f32 %v252, %v612
        %v687 = vadd.f32 %v253, %v617
        %v688 = vadd.f32 %v254, %v622
        %v689 = vadd.f32 %v255, %v627
        %v690 = vadd.f32 %v256, %v632
        %v691 = vadd.f32 %v257, %v637
        %v692 = vadd.f32 %v258, %v642
        %v693 = vadd.f32 %v259, %v647
        %v694 = vadd.f32 %v260, %v652
        %v695 = vadd.f32 %v261, %v657
        %v696 = vadd.f32 %v262, %v662
        %v697 = vadd.f32 %v263, %v667
        %v698 = vadd.f32 %v264, %v672
        %v699 = vadd.f32 %v265, %v677
        %v700 = vadd.f32 %v266, %v682
        %701 = vst [vmem:[#allocation2] sm:$0xff] %v685
        %702 = vst [vmem:[#allocation2 + $0x8] sm:$0xff] %v686
        %703 = vst [vmem:[#allocation2 + $0x10] sm:$0xff] %v687
        %704 = vst [vmem:[#allocation2 + $0x18] sm:$0xff] %v688
        %705 = vst [vmem:[#allocation2 + $0x20] sm:$0xff] %v689
        %706 = vst [vmem:[#allocation2 + $0x28] sm:$0xff] %v690
        %707 = vst [vmem:[#allocation2 + $0x30] sm:$0xff] %v691
        %708 = vst [vmem:[#allocation2 + $0x38] sm:$0xff] %v692
        %709 = vst [vmem:[#allocation2 + $0x40] sm:$0xff] %v693
        %710 = vst [vmem:[#allocation2 + $0x48] sm:$0xff] %v694
        %711 = vst [vmem:[#allocation2 + $0x50] sm:$0xff] %v695
        %712 = vst [vmem:[#allocation2 + $0x58] sm:$0xff] %v696
        %713 = vst [vmem:[#allocation2 + $0x60] sm:$0xff] %v697
        %714 = vst [vmem:[#allocation2 + $0x68] sm:$0xff] %v698
        %715 = vst [vmem:[#allocation2 + $0x70] sm:$0xff] %v699
        %716 = vst [vmem:[#allocation2 + $0x78] sm:$0xff] %v700
        %p717 = scmp.eq.s32.totalorder %s27, 1
        // Predicated region
        $region41: #{tpu_custom_call.1} parent=27 // pred_check
          %p718 = pneg %p717
        $region42: #{tpu_custom_call.1} parent=27 // pred_check_branch
          %720 = sbr.rel (%p718) target = $region44
        $region43: #{tpu_custom_call.1} parent=27 // pred_region
          %v721 = vld [vmem:[#allocation2] sm:$0xff]
          %v722 = vld [vmem:[#allocation2 + $0x8] sm:$0xff]
          %v723 = vld [vmem:[#allocation2 + $0x10] sm:$0xff]
          %v724 = vld [vmem:[#allocation2 + $0x18] sm:$0xff]
          %v725 = vld [vmem:[#allocation2 + $0x20] sm:$0xff]
          %v726 = vld [vmem:[#allocation2 + $0x28] sm:$0xff]
          %v727 = vld [vmem:[#allocation2 + $0x30] sm:$0xff]
          %v728 = vld [vmem:[#allocation2 + $0x38] sm:$0xff]
          %v729 = vld [vmem:[#allocation2 + $0x40] sm:$0xff]
          %v730 = vld [vmem:[#allocation2 + $0x48] sm:$0xff]
          %v731 = vld [vmem:[#allocation2 + $0x50] sm:$0xff]
          %v732 = vld [vmem:[#allocation2 + $0x58] sm:$0xff]
          %v733 = vld [vmem:[#allocation2 + $0x60] sm:$0xff]
          %v734 = vld [vmem:[#allocation2 + $0x68] sm:$0xff]
          %v735 = vld [vmem:[#allocation2 + $0x70] sm:$0xff]
          %v736 = vld [vmem:[#allocation2 + $0x78] sm:$0xff]
          %737 = vst [vmem:[#allocation8] sm:$0xff] %v721
          %738 = vst [vmem:[#allocation8 + $0x8] sm:$0xff] %v722
          %739 = vst [vmem:[#allocation8 + $0x10] sm:$0xff] %v723
          %740 = vst [vmem:[#allocation8 + $0x18] sm:$0xff] %v724
          %741 = vst [vmem:[#allocation8 + $0x20] sm:$0xff] %v725
          %742 = vst [vmem:[#allocation8 + $0x28] sm:$0xff] %v726
          %743 = vst [vmem:[#allocation8 + $0x30] sm:$0xff] %v727
          %744 = vst [vmem:[#allocation8 + $0x38] sm:$0xff] %v728
          %745 = vst [vmem:[#allocation8 + $0x40] sm:$0xff] %v729
          %746 = vst [vmem:[#allocation8 + $0x48] sm:$0xff] %v730
          %747 = vst [vmem:[#allocation8 + $0x50] sm:$0xff] %v731
          %748 = vst [vmem:[#allocation8 + $0x58] sm:$0xff] %v732
          %749 = vst [vmem:[#allocation8 + $0x60] sm:$0xff] %v733
          %750 = vst [vmem:[#allocation8 + $0x68] sm:$0xff] %v734
          %751 = vst [vmem:[#allocation8 + $0x70] sm:$0xff] %v735
          %752 = vst [vmem:[#allocation8 + $0x78] sm:$0xff] %v736
        $region44: #{tpu_custom_call.1} parent=27 // pred_fallthru
          _
        // Predicated region
        $region45: #{tpu_custom_call.1} parent=27 // pred_check
          %p753 = pneg %p115
        $region46: #{tpu_custom_call.1} parent=27 // pred_check_branch
          %755 = sbr.rel (%p753) target = $region48
        $region47: #{tpu_custom_call.1} parent=27 // pred_region
          %s756 = smul.u32 16, %s25
          %s758 = ssub.s32 2048, 2048
          %759 = vsyncadd [#allocation5], %s758
          %s760 = sadd.s32 %s26, %s756
          %s761 = smul.addr %s760, 128
          %s762 = scalar_lea.hbm %s2, %s761
          %s763 = sshll.u32 [#allocation8], 4
          %s764 = int_to_ptr.vmem [resolvable:$true] %s763
          %769 = dma.vmem_to_hbm [thread:$0]  %s764, 2048, %s762, [#allocation5], 128, 128, 8
        $region48: #{tpu_custom_call.1} parent=27 // pred_fallthru
          _
        // Predicated region
        $region49: #{tpu_custom_call.1} parent=27 // pred_check
          %p770 = pneg %p115
        $region50: #{tpu_custom_call.1} parent=27 // pred_check_branch
          %772 = sbr.rel (%p770) target = $region52
        $region51: #{tpu_custom_call.1} parent=27 // pred_region
          %773 = dma.done [#allocation5], 2048
        $region52: #{tpu_custom_call.1} parent=27 // pred_fallthru
          _
      $region28: #{tpu_custom_call.1} parent=5 // pred_fallthru
        _
      %p774 = scmp.le.s32.totalorder 2, %s15
      // Predicated region
      $region53: #{tpu_custom_call.1} parent=5 // pred_check
        %p775 = pneg %p774
      $region54: #{tpu_custom_call.1} parent=5 // pred_check_branch
        %777 = sbr.rel (%p775) target = $region56
      $region55: #{tpu_custom_call.1} parent=5 // pred_region
        %s778 = ssub.s32 %s15, 2
      $region56: #{tpu_custom_call.1} parent=5 // pred_fallthru
        _
    $region6: #{tpu_custom_call.1} parent=1 // loop_footer
      %s19 = sadd.s32 1, %s15
    $region7: #{tpu_custom_call.1} parent=1 // loop_footer_branch
      %14 = sbr.rel target = $region3
    $region8: #{tpu_custom_call.1} parent=1 // loop_exit
      _
    %779 = vsyncpa [#allocation4], 1
    %s780 = scalar_lea.sflag [#allocation4], 1
    %781 = vsyncpa %s780, 1
    %782 = vsyncpa [#allocation7], 1
    %s783 = scalar_lea.sflag [#allocation7], 1
    %784 = vsyncpa %s783, 1
    %785 = vsyncpa [#allocation5], 1
    %s786 = scalar_lea.sflag [#allocation5], 1
    %787 = vsyncpa %s786, 1

</llo_original>
